<compile_context>
chip_gen: v5e
topology: v5e:2x2
jax: 0.10.0
libtpu: 0.0.40
codegen_flags: <defaults>
</compile_context>

<pallas_src>
import jax
import jax.numpy as jnp
from jax.experimental import pallas as pl
from jax.experimental.pallas import tpu as pltpu


def mlp_kernel(x_ref, w1_ref, b1_ref, w2_ref, b2_ref, w3_ref, b3_ref, o_ref):
    # x_ref: (1, TN)   batch tile on lanes
    # w1_ref: (50, 1), b1_ref: (50, 1)
    # w2_ref: (10, 50), b2_ref: (10, 1)
    # w3_ref: (10, 1),  b3_ref: (1, 1)
    x = x_ref[...]                                            # (1, TN)

    # Layer 1: Linear(1, 50) + ReLU == outer product -> VPU broadcast multiply.
    h1 = jnp.maximum(w1_ref[...] * x + b1_ref[...], 0.0)      # (50, TN)

    # Layer 2: Linear(50, 10) + ReLU == the only real matmul; contraction (50)
    # on sublanes, batch tile on lanes -> lane-dense MXU result.
    h2 = jnp.dot(w2_ref[...], h1, preferred_element_type=jnp.float32)
    h2 = jnp.maximum(h2 + b2_ref[...], 0.0)                   # (10, TN)

    # Layer 3: Linear(10, 1) == dot-product reduction -> VPU mul + sublane sum.
    out = jnp.sum(w3_ref[...] * h2, axis=0, keepdims=True)    # (1, TN)
    o_ref[...] = (out + b3_ref[...]).astype(o_ref.dtype)


def net_forward(x, params, *, tile_n=1024):
    """x: (N, 1) float32. Returns (N, 1) float32.

    params (feature-major layout):
      w1: (50, 1)  b1: (50, 1)
      w2: (10, 50) b2: (10, 1)
      w3: (10, 1)  b3: (1, 1)
    """
    n = x.shape[0]
    lane = 128

    # Pick the batch tile: large for throughput, but no bigger than the
    # (lane-padded) batch itself so tiny batches don't pay for huge padding.
    padded_n = ((n + lane - 1) // lane) * lane
    tile_n = max(lane, min(tile_n, padded_n))
    # Ensure the padded batch is a multiple of the tile.
    padded_n = ((padded_n + tile_n - 1) // tile_n) * tile_n

    # Put batch on the lane axis: (N, 1) -> (1, N), zero-pad to tile multiple.
    x_t = x.reshape(1, n)
    if padded_n != n:
        x_t = jnp.pad(x_t, ((0, 0), (0, padded_n - n)))

    grid = (padded_n // tile_n,)

    # Weights/biases: full-array blocks, index_map always (0, 0) -> they stay
    # VMEM-resident across every batch-grid step.
    def const_spec(shape):
        return pl.BlockSpec(shape, lambda i: (0, 0))

    out_t = pl.pallas_call(
        mlp_kernel,
        out_shape=jax.ShapeDtypeStruct((1, padded_n), jnp.float32),
        grid=grid,
        in_specs=[
            pl.BlockSpec((1, tile_n), lambda i: (0, i)),   # x tile
            const_spec((50, 1)),                           # w1
            const_spec((50, 1)),                           # b1
            const_spec((10, 50)),                          # w2
            const_spec((10, 1)),                           # b2
            const_spec((10, 1)),                           # w3
            const_spec((1, 1)),                            # b3
        ],
        out_specs=pl.BlockSpec((1, tile_n), lambda i: (0, i)),
        compiler_params=pltpu.CompilerParams(
            dimension_semantics=("parallel",)),
    )(
        x_t,
        params["w1"], params["b1"],
        params["w2"], params["b2"],
        params["w3"], params["b3"],
    )

    return out_t[:, :n].reshape(n, 1)


def init_params(key):
    """PyTorch Linear default init: U(-1/sqrt(fan_in), 1/sqrt(fan_in)).

    Stored feature-major for the (F, N) activation layout:
      w1: (50, 1), w2: (10, 50) [== torch weight layout (out, in)], w3: (10, 1)
      biases as column vectors (out, 1).
    """
    params = {}
    keys = jax.random.split(key, 6)

    # Layer 1: in=1, out=50
    b = 1.0
    params["w1"] = jax.random.uniform(keys[0], (50, 1), minval=-b, maxval=b,
                                      dtype=jnp.float32)
    params["b1"] = jax.random.uniform(keys[1], (50, 1), minval=-b, maxval=b,
                                      dtype=jnp.float32)
    # Layer 2: in=50, out=10
    b = 1.0 / (50.0 ** 0.5)
    params["w2"] = jax.random.uniform(keys[2], (10, 50), minval=-b, maxval=b,
                                      dtype=jnp.float32)
    params["b2"] = jax.random.uniform(keys[3], (10, 1), minval=-b, maxval=b,
                                      dtype=jnp.float32)
    # Layer 3: in=10, out=1
    b = 1.0 / (10.0 ** 0.5)
    params["w3"] = jax.random.uniform(keys[4], (10, 1), minval=-b, maxval=b,
                                      dtype=jnp.float32)
    params["b3"] = jax.random.uniform(keys[5], (1, 1), minval=-b, maxval=b,
                                      dtype=jnp.float32)
    return params


if __name__ == "__main__":
    key = jax.random.PRNGKey(0)
    pkey, xkey = jax.random.split(key)

    params = init_params(pkey)
    # Input: batch of 8 scalar features, shape (8, 1) as implied by Linear(1, 50).
    x = jax.random.normal(xkey, (8, 1), dtype=jnp.float32)

    out = net_forward(x, params)
    out = jax.block_until_ready(out)

    # Reference check in plain JAX (row-major math with the same params).
    h = jnp.maximum(x @ params["w1"].T + params["b1"].T, 0.0)   # (8, 50)
    h = jnp.maximum(h @ params["w2"].T + params["b2"].T, 0.0)   # (8, 10)
    ref = h @ params["w3"] + params["b3"]                       # (8, 1)

    assert out.shape == (8, 1)
    assert jnp.allclose(out, ref, atol=1e-5, rtol=1e-5), "mismatch vs reference"

    print("KERNEL_OK")
</pallas_src>

<mosaic_0001>
module attributes {stable_mosaic.version = 11 : i64} {
  func.func @mlp_kernel(%arg0: i32, %arg1: memref<1x128xf32, #tpu.memory_space<vmem>>, %arg2: memref<50x1xf32, #tpu.memory_space<vmem>>, %arg3: memref<50x1xf32, #tpu.memory_space<vmem>>, %arg4: memref<10x50xf32, #tpu.memory_space<vmem>>, %arg5: memref<10x1xf32, #tpu.memory_space<vmem>>, %arg6: memref<10x1xf32, #tpu.memory_space<vmem>>, %arg7: memref<1x1xf32, #tpu.memory_space<vmem>>, %arg8: memref<1x128xf32, #tpu.memory_space<vmem>>) attributes {dimension_semantics = [#tpu.dimension_semantics<parallel>], iteration_bounds = array<i64: 1>, scalar_prefetch = 0 : i64, scratch_operands = 0 : i64, tpu.core_type = #tpu.core_type<tc>, window_params = [{transform_indices = @transform_0, window_bounds = array<i64: 1, 128>}, {pipeline_mode = #tpu.pipeline_mode<synchronous>, transform_indices = @transform_1, window_bounds = array<i64: 50, 1>}, {pipeline_mode = #tpu.pipeline_mode<synchronous>, transform_indices = @transform_2, window_bounds = array<i64: 50, 1>}, {pipeline_mode = #tpu.pipeline_mode<synchronous>, transform_indices = @transform_3, window_bounds = array<i64: 10, 50>}, {pipeline_mode = #tpu.pipeline_mode<synchronous>, transform_indices = @transform_4, window_bounds = array<i64: 10, 1>}, {pipeline_mode = #tpu.pipeline_mode<synchronous>, transform_indices = @transform_5, window_bounds = array<i64: 10, 1>}, {pipeline_mode = #tpu.pipeline_mode<synchronous>, transform_indices = @transform_6, window_bounds = array<i64: 1, 1>}, {transform_indices = @transform_7, window_bounds = array<i64: 1, 128>}]} {
    %c0 = arith.constant 0 : index
    %c0_0 = arith.constant 0 : index
    %0 = vector.load %arg1[%c0, %c0_0] : memref<1x128xf32, #tpu.memory_space<vmem>>, vector<1x128xf32>
    %c0_1 = arith.constant 0 : index
    %c0_2 = arith.constant 0 : index
    %1 = vector.load %arg2[%c0_1, %c0_2] : memref<50x1xf32, #tpu.memory_space<vmem>>, vector<50x1xf32>
    %2 = vector.broadcast %1 : vector<50x1xf32> to vector<50x128xf32>
    %3 = vector.broadcast %0 : vector<1x128xf32> to vector<50x128xf32>
    %4 = arith.mulf %2, %3 : vector<50x128xf32>
    %c0_3 = arith.constant 0 : index
    %c0_4 = arith.constant 0 : index
    %5 = vector.load %arg3[%c0_3, %c0_4] : memref<50x1xf32, #tpu.memory_space<vmem>>, vector<50x1xf32>
    %6 = vector.broadcast %5 : vector<50x1xf32> to vector<50x128xf32>
    %7 = arith.addf %4, %6 : vector<50x128xf32>
    %cst = arith.constant 0.000000e+00 : f32
    %8 = vector.broadcast %cst : f32 to vector<50x128xf32>
    %9 = arith.maximumf %7, %8 : vector<50x128xf32>
    %c0_5 = arith.constant 0 : index
    %c0_6 = arith.constant 0 : index
    %10 = vector.load %arg4[%c0_5, %c0_6] : memref<10x50xf32, #tpu.memory_space<vmem>>, vector<10x50xf32>
    %cst_7 = arith.constant dense<0.000000e+00> : vector<10x128xf32>
    %11 = tpu.matmul %10, %9, %cst_7 {dimension_numbers = #tpu.dot_dimension_numbers<[1], [0], [0], [1], [0, 0, 1, 1], [], []>} : vector<10x50xf32>, vector<50x128xf32>, vector<10x128xf32> -> vector<10x128xf32>
    %c0_8 = arith.constant 0 : index
    %c0_9 = arith.constant 0 : index
    %12 = vector.load %arg5[%c0_8, %c0_9] : memref<10x1xf32, #tpu.memory_space<vmem>>, vector<10x1xf32>
    %13 = vector.broadcast %12 : vector<10x1xf32> to vector<10x128xf32>
    %14 = arith.addf %11, %13 : vector<10x128xf32>
    %cst_10 = arith.constant 0.000000e+00 : f32
    %15 = vector.broadcast %cst_10 : f32 to vector<10x128xf32>
    %16 = arith.maximumf %14, %15 : vector<10x128xf32>
    %c0_11 = arith.constant 0 : index
    %c0_12 = arith.constant 0 : index
    %17 = vector.load %arg6[%c0_11, %c0_12] : memref<10x1xf32, #tpu.memory_space<vmem>>, vector<10x1xf32>
    %18 = vector.broadcast %17 : vector<10x1xf32> to vector<10x128xf32>
    %19 = arith.mulf %18, %16 : vector<10x128xf32>
    %cst_13 = arith.constant dense<0.000000e+00> : vector<128xf32>
    %20 = vector.multi_reduction <add>, %19, %cst_13 [0] : vector<10x128xf32> to vector<128xf32>
    %21 = vector.shape_cast %20 : vector<128xf32> to vector<1x128xf32>
    %c0_14 = arith.constant 0 : index
    %c0_15 = arith.constant 0 : index
    %22 = vector.load %arg7[%c0_14, %c0_15] : memref<1x1xf32, #tpu.memory_space<vmem>>, vector<1x1xf32>
    %23 = vector.broadcast %22 : vector<1x1xf32> to vector<1x128xf32>
    %24 = arith.addf %21, %23 : vector<1x128xf32>
    %c0_16 = arith.constant 0 : index
    %c0_17 = arith.constant 0 : index
    %25 = vector.load %arg8[%c0_16, %c0_17] : memref<1x128xf32, #tpu.memory_space<vmem>>, vector<1x128xf32>
    tpu.vector_store %arg8[%c0_16, %c0_17], %24 {strides = array<i32>} : memref<1x128xf32, #tpu.memory_space<vmem>>, vector<1x128xf32>,
    return
  }
  func.func @transform_0(%arg0: i32) -> (i32, i32) {
    %c0_i32 = arith.constant 0 : i32
    %c0_i32_0 = arith.constant 0 : i32
    return %c0_i32, %arg0 : i32, i32
  }
  func.func @transform_1(%arg0: i32) -> (i32, i32) {
    %c0_i32 = arith.constant 0 : i32
    %c0_i32_0 = arith.constant 0 : i32
    %c0_i32_1 = arith.constant 0 : i32
    return %c0_i32, %c0_i32_0 : i32, i32
  }
  func.func @transform_2(%arg0: i32) -> (i32, i32) {
    %c0_i32 = arith.constant 0 : i32
    %c0_i32_0 = arith.constant 0 : i32
    %c0_i32_1 = arith.constant 0 : i32
    return %c0_i32, %c0_i32_0 : i32, i32
  }
  func.func @transform_3(%arg0: i32) -> (i32, i32) {
    %c0_i32 = arith.constant 0 : i32
    %c0_i32_0 = arith.constant 0 : i32
    %c0_i32_1 = arith.constant 0 : i32
    return %c0_i32, %c0_i32_0 : i32, i32
  }
  func.func @transform_4(%arg0: i32) -> (i32, i32) {
    %c0_i32 = arith.constant 0 : i32
    %c0_i32_0 = arith.constant 0 : i32
    %c0_i32_1 = arith.constant 0 : i32
    return %c0_i32, %c0_i32_0 : i32, i32
  }
  func.func @transform_5(%arg0: i32) -> (i32, i32) {
    %c0_i32 = arith.constant 0 : i32
    %c0_i32_0 = arith.constant 0 : i32
    %c0_i32_1 = arith.constant 0 : i32
    return %c0_i32, %c0_i32_0 : i32, i32
  }
  func.func @transform_6(%arg0: i32) -> (i32, i32) {
    %c0_i32 = arith.constant 0 : i32
    %c0_i32_0 = arith.constant 0 : i32
    %c0_i32_1 = arith.constant 0 : i32
    return %c0_i32, %c0_i32_0 : i32, i32
  }
  func.func @transform_7(%arg0: i32) -> (i32, i32) {
    %c0_i32 = arith.constant 0 : i32
    %c0_i32_0 = arith.constant 0 : i32
    return %c0_i32, %arg0 : i32, i32
  }
}

</mosaic_0001>

<llo_original>
// kernel: tpu_custom_call.1
$region0: #{tpu_custom_call.1}
  #allocation0 [shape = 'u32[]', space=smem, size = 0x4, offset = 0x4, fixed_abs, tag = 'smem constant byte address 0x4 - core index']
  #allocation1 [shape = 'u32[72,128]{1,0:T(1,128)}', space=vmem, size = 0x9000, scoped, tag = 'internal scratch']
  #allocation2 [shape = 'f32[1,1]{1,0:T(1,128)S(1)}', space=vmem, size = 0x200, scoped, tag = 'scoped memory for tpu_custom_call.1']
  %s0 = inlined_call_operand.vmem [shape: f32[1,128], index: 0, kind: input, shape index: {}]
  %s1 = inlined_call_operand.vmem [shape: f32[50,1], index: 1, kind: input, shape index: {}]
  %s2 = inlined_call_operand.vmem [shape: f32[50,1], index: 2, kind: input, shape index: {}]
  %s3 = inlined_call_operand.vmem [shape: f32[10,50], index: 3, kind: input, shape index: {}]
  %s4 = inlined_call_operand.vmem [shape: f32[10,1], index: 4, kind: input, shape index: {}]
  %s5 = inlined_call_operand.vmem [shape: f32[10,1], index: 5, kind: input, shape index: {}]
  %s6 = inlined_call_operand.<no memory space> [shape: f32[1,1], index: 6, kind: input, shape index: {}]
  %s7 = inlined_call_operand.hbm [shape: f32[1,128], index: 7, kind: output, shape index: {}]
  %s8 = sld [smem:[#allocation0]]
  $region38: #{tpu_custom_call.1} parent=0
    _
  %s10 = ssub.s32 1, %s8
  %s11 = scalar_select 0, %s10, %s8
  %v12 = vstv %s6
  %13 = vst [vmem:[#allocation2] sm:$0x1] %v12
  $region1: #{tpu_custom_call.1} parent=0
    #allocation3 [shape = 'u8[512]{0}', space=vmem, size = 0x400, scoped, tag = 'output window, operand 0, single buffered']
    #allocation4 [shape = 's32[1]{0}', space=sflag, size = 0x4, scoped, tag = 'scoped memory for tpu_custom_call.1']
    %14 = vsyncpa [#allocation4], 0
    // Predicated region
    $region2: #{tpu_custom_call.1} parent=1 // pred_check
      _
    $region3: #{tpu_custom_call.1} parent=1 // pred_check_branch
      %16 = sbr.rel (0) target = $region5
    $region4: #{tpu_custom_call.1} parent=1 // pred_region
      _
    $region5: #{tpu_custom_call.1} parent=1 // pred_fallthru
      _
    // Predicated region
    $region6: #{tpu_custom_call.1} parent=1 // pred_check
      _
    $region7: #{tpu_custom_call.1} parent=1 // pred_check_branch
      %18 = sbr.rel (0) target = $region9
    $region8: #{tpu_custom_call.1} parent=1 // pred_region
      _
    $region9: #{tpu_custom_call.1} parent=1 // pred_fallthru
      _
    // Predicated region
    $region10: #{tpu_custom_call.1} parent=1 // pred_check
      _
    $region11: #{tpu_custom_call.1} parent=1 // pred_check_branch
      %20 = sbr.rel (0) target = $region13
    $region12: #{tpu_custom_call.1} parent=1 // pred_region
      _
    $region13: #{tpu_custom_call.1} parent=1 // pred_fallthru
      _
    // Predicated region
    $region14: #{tpu_custom_call.1} parent=1 // pred_check
      _
    $region15: #{tpu_custom_call.1} parent=1 // pred_check_branch
      %22 = sbr.rel (0) target = $region17
    $region16: #{tpu_custom_call.1} parent=1 // pred_region
      _
    $region17: #{tpu_custom_call.1} parent=1 // pred_fallthru
      _
    // Predicated region
    $region18: #{tpu_custom_call.1} parent=1 // pred_check
      _
    $region19: #{tpu_custom_call.1} parent=1 // pred_check_branch
      %24 = sbr.rel (0) target = $region21
    $region20: #{tpu_custom_call.1} parent=1 // pred_region
      _
    $region21: #{tpu_custom_call.1} parent=1 // pred_fallthru
      _
    // Predicated region
    $region22: #{tpu_custom_call.1} parent=1 // pred_check
      _
    $region23: #{tpu_custom_call.1} parent=1 // pred_check_branch
      %26 = sbr.rel (0) target = $region25
    $region24: #{tpu_custom_call.1} parent=1 // pred_region
      _
    $region25: #{tpu_custom_call.1} parent=1 // pred_fallthru
      _
    // Predicated region
    $region26: #{tpu_custom_call.1} parent=1 // pred_check
      _
    $region27: #{tpu_custom_call.1} parent=1 // pred_check_branch
      %28 = sbr.rel (0) target = $region29
    $region28: #{tpu_custom_call.1} parent=1 // pred_region
      _
    $region29: #{tpu_custom_call.1} parent=1 // pred_fallthru
      _
    %v29 = vld [vmem:[%s0] sm:$0x1]
    %v30 = vld [vmem:[%s1] sm:$0xff]
    %v31 = vld [vmem:[%s1 + $0x8] sm:$0xff]
    %v32 = vld [vmem:[%s1 + $0x10] sm:$0xff]
    %v33 = vld [vmem:[%s1 + $0x18] sm:$0xff]
    %v34 = vld [vmem:[%s1 + $0x20] sm:$0xff]
    %v35 = vld [vmem:[%s1 + $0x28] sm:$0xff]
    %v36 = vld [vmem:[%s1 + $0x30] sm:$0x3]
    %38 = vset.pattern.permute.xlu0 0
    %39 = vperm.xlu0 %38, %v30
    %v40 = vpop.permute.xlu0 %39
    %43 = vset.pattern.permute.xlu0 0
    %44 = vperm.xlu0 %43, %v31
    %v45 = vpop.permute.xlu0 %44
    %48 = vset.pattern.permute.xlu0 0
    %49 = vperm.xlu0 %48, %v32
    %v50 = vpop.permute.xlu0 %49
    %53 = vset.pattern.permute.xlu0 0
    %54 = vperm.xlu0 %53, %v33
    %v55 = vpop.permute.xlu0 %54
    %58 = vset.pattern.permute.xlu0 0
    %59 = vperm.xlu0 %58, %v34
    %v60 = vpop.permute.xlu0 %59
    %63 = vset.pattern.permute.xlu0 0
    %64 = vperm.xlu0 %63, %v35
    %v65 = vpop.permute.xlu0 %64
    %68 = vset.pattern.permute.xlu0 0
    %69 = vperm.xlu0 %68, %v36
    %v70 = vpop.permute.xlu0 %69
    %v73 = vperm.slane %v29, 0
    %v75 = vmul.f32 %v40, %v73
    %v76 = vmul.f32 %v45, %v73
    %v77 = vmul.f32 %v50, %v73
    %v78 = vmul.f32 %v55, %v73
    %v79 = vmul.f32 %v60, %v73
    %v80 = vmul.f32 %v65, %v73
    %v81 = vmul.f32 %v70, %v73
    %v82 = vld [vmem:[%s2] sm:$0xff]
    %v83 = vld [vmem:[%s2 + $0x8] sm:$0xff]
    %v84 = vld [vmem:[%s2 + $0x10] sm:$0xff]
    %v85 = vld [vmem:[%s2 + $0x18] sm:$0xff]
    %v86 = vld [vmem:[%s2 + $0x20] sm:$0xff]
    %v87 = vld [vmem:[%s2 + $0x28] sm:$0xff]
    %v88 = vld [vmem:[%s2 + $0x30] sm:$0x3]
    %90 = vset.pattern.permute.xlu0 0
    %91 = vperm.xlu0 %90, %v82
    %v92 = vpop.permute.xlu0 %91
    %95 = vset.pattern.permute.xlu0 0
    %96 = vperm.xlu0 %95, %v83
    %v97 = vpop.permute.xlu0 %96
    %100 = vset.pattern.permute.xlu0 0
    %101 = vperm.xlu0 %100, %v84
    %v102 = vpop.permute.xlu0 %101
    %105 = vset.pattern.permute.xlu0 0
    %106 = vperm.xlu0 %105, %v85
    %v107 = vpop.permute.xlu0 %106
    %110 = vset.pattern.permute.xlu0 0
    %111 = vperm.xlu0 %110, %v86
    %v112 = vpop.permute.xlu0 %111
    %115 = vset.pattern.permute.xlu0 0
    %116 = vperm.xlu0 %115, %v87
    %v117 = vpop.permute.xlu0 %116
    %120 = vset.pattern.permute.xlu0 0
    %121 = vperm.xlu0 %120, %v88
    %v122 = vpop.permute.xlu0 %121
    %v124 = vadd.f32 %v75, %v92
    %v125 = vadd.f32 %v76, %v97
    %v126 = vadd.f32 %v77, %v102
    %v127 = vadd.f32 %v78, %v107
    %v128 = vadd.f32 %v79, %v112
    %v129 = vadd.f32 %v80, %v117
    %v130 = vadd.f32 %v81, %v122
    %v131 = vmax.f32 %v124, 0.0
    %v132 = vmax.f32 %v125, 0.0
    %v133 = vmax.f32 %v126, 0.0
    %v134 = vmax.f32 %v127, 0.0
    %v135 = vmax.f32 %v128, 0.0
    %v136 = vmax.f32 %v129, 0.0
    %v137 = vmax.f32 %v130, 0.0
    %v138 = vld [vmem:[%s3] sm:$0xff]
    %v139 = vld [vmem:[%s3 + $0x8] sm:$0x3]
    %v140 = vld [vmem:[%s4] sm:$0xff]
    %v141 = vld [vmem:[%s4 + $0x8] sm:$0x3]
    %143 = vset.pattern.permute.xlu0 0
    %144 = vperm.xlu0 %143, %v140
    %v145 = vpop.permute.xlu0 %144
    %148 = vset.pattern.permute.xlu0 0
    %149 = vperm.xlu0 %148, %v141
    %v150 = vpop.permute.xlu0 %149
    %vm152 = vcmask 408576
    %v154 = vsel %vm152, %v138, 0
    %v157 = vsel %vm152, %v139, 0
    %vm159 = vcmask 1041408
    %v161 = vsel %vm159, %v137, 0
    %163 = vmatpush.msra.mxu0 0.0
    %164 = vmatpush.msra.mxu0 0.0
    %165 = vmatpush.msra.mxu0 0.0
    %166 = vmatpush.msra.mxu0 0.0
    %167 = vmatpush.msra.mxu0 0.0
    %168 = vmatpush.msra.mxu0 0.0
    %169 = vmatpush.msra.mxu0 0.0
    %170 = vmatpush.msra.mxu0 0.0
    %171 = vmatpush.msra.mxu0 0.0
    %172 = vmatpush.msra.mxu0 %v161
    %173 = vmatpush.msra.mxu0 %v136
    %174 = vmatpush.msra.mxu0 %v135
    %175 = vmatpush.msra.mxu0 %v134
    %176 = vmatpush.msra.mxu0 %v133
    %177 = vmatpush.msra.mxu0 %v132
    %178 = vmatpush.msra.mxu0 %v131
    %179 = vmatmul.f32.gmra.mxu0 %v154
    %v180 = vpop.f32.mrf.mxu0
    %v181 = vadd.f32 %v145, %v180
    %182 = vmatmul.f32.gmra.mxu0 %v157
    %v183 = vpop.f32.mrf.mxu0
    %v184 = vadd.f32 %v150, %v183
    %185 = vdwg.mxu0
    %v186 = vmax.f32 %v181, 0.0
    %v187 = vmax.f32 %v184, 0.0
    %v188 = vld [vmem:[%s5] sm:$0xff]
    %v189 = vld [vmem:[%s5 + $0x8] sm:$0x3]
    %191 = vset.pattern.permute.xlu0 0
    %192 = vperm.xlu0 %191, %v188
    %v193 = vpop.permute.xlu0 %192
    %196 = vset.pattern.permute.xlu0 0
    %197 = vperm.xlu0 %196, %v189
    %v198 = vpop.permute.xlu0 %197
    %v200 = vmul.f32 %v193, %v186
    %v201 = vmul.f32 %v198, %v187
    %v202 = vsel %vm159, %v201, 0.0
    %v203 = vadd.f32 %v200, %v202
    %v204 = vrot.slane %v203, 4
    %v205 = vadd.f32 %v203, %v204
    %v206 = vrot.slane %v205, 2
    %v207 = vadd.f32 %v205, %v206
    %v208 = vrot.slane %v207, 1
    %v209 = vadd.f32 %v207, %v208
    %v210 = vld [vmem:[#allocation2] sm:$0x1]
    %212 = vset.pattern.permute.xlu0 0
    %213 = vperm.xlu0 %212, %v210
    %v214 = vpop.permute.xlu0 %213
    %v216 = vperm.slane %v214, 0
    %v217 = vadd.f32 %v209, %v216
    %218 = vst [vmem:[#allocation3] sm:$0x1] %v217
    // Predicated region
    $region30: #{tpu_custom_call.1} parent=1 // pred_check
      _
    $region31: #{tpu_custom_call.1} parent=1 // pred_check_branch
      %220 = sbr.rel (0) target = $region33
    $region32: #{tpu_custom_call.1} parent=1 // pred_region
      %222 = vsyncadd [#allocation4], 0
      %s224 = sshll.u32 [#allocation3], 4
      %s225 = int_to_ptr.vmem [resolvable:$true] %s224
      %s226 = sshll.u32 %s7, 4
      %s227 = int_to_ptr.hbm [resolvable:$true] %s226
      %229 = dma.vmem_to_hbm [thread:$0]  %s225, 16, %s227, [#allocation4]
    $region33: #{tpu_custom_call.1} parent=1 // pred_fallthru
      _
    // Predicated region
    $region34: #{tpu_custom_call.1} parent=1 // pred_check
      _
    $region35: #{tpu_custom_call.1} parent=1 // pred_check_branch
      %231 = sbr.rel (0) target = $region37
    $region36: #{tpu_custom_call.1} parent=1 // pred_region
      %233 = dma.done [#allocation4], 16
    $region37: #{tpu_custom_call.1} parent=1 // pred_fallthru
      _
    %234 = vsyncpa [#allocation4], 1

</llo_original>
